<compile_context>
chip_gen: v6e
topology: v6e:2x2x1
jax: 0.10.0
libtpu: 0.0.40
codegen_flags: <defaults>
</compile_context>

<pallas_src>
import jax
import jax.numpy as jnp
from jax.experimental import pallas as pl
from jax.experimental.pallas import tpu as pltpu


# ----------------------------------------------------------------------------
# Fused kernel: (split-weight lin1) -> ReLU -> (VPU lin2) -> ReLU
# ----------------------------------------------------------------------------
def discriminator_kernel(e_ref, p_ref, w1e_ref, w1p_ref, b1_ref,
                         w2_ref, b2_ref, out_ref):
    # cat(e, p) @ W1 + b1  ==  e @ W1[:H] + p @ W1[H:] + b1   (no concat needed)
    h = (jnp.dot(e_ref[...], w1e_ref[...], preferred_element_type=jnp.float32)
         + jnp.dot(p_ref[...], w1p_ref[...], preferred_element_type=jnp.float32)
         + b1_ref[...])
    h = jnp.maximum(h, 0.0)

    # Second layer has output width 1: VPU multiply + lane reduction instead of
    # an N=1 MXU matmul (avoids a serialized MXU drain every grid step).
    out = jnp.sum(h * w2_ref[...], axis=-1, keepdims=True) + b2_ref[...]
    out_ref[...] = jnp.maximum(out, 0.0).astype(out_ref.dtype)


# ----------------------------------------------------------------------------
# Wrapper: single fused pallas_call, unpadded row-block grid
# ----------------------------------------------------------------------------
def _round_up(x, m):
    return ((x + m - 1) // m) * m


def _vmem_estimate(tm, H, in_bytes, w_bytes):
    # double-buffered inputs + double-buffered (constant-index) weights + outputs
    inputs = 2 * 2 * tm * H * in_bytes
    weights = 2 * (2 * H * H + 2 * H + 1) * w_bytes
    outs = 2 * tm * 4
    return inputs + weights + outs


def discriminator_forward(embeddings, positive, w1, b1, w2, b2, *, block_rows=2048):
    """embeddings, positive: [B, H]; w1: [2H, H]; b1: [H]; w2: [H, 1]; b2: [1].

    Weights are (in, out) layout, i.e. transposed relative to torch Linear.weight.
    Call under jax.jit so the weight split/reshape below fuses with the kernel.
    """
    B, H = embeddings.shape
    assert positive.shape == (B, H)
    assert w1.shape == (2 * H, H) and w2.shape == (H, 1)

    # Split lin1 weight so no in-kernel feature concat is needed; keep native dtype.
    w1e = w1[:H, :]
    w1p = w1[H:, :]
    b1r = b1.reshape(1, H)
    w2r = w2.reshape(1, H)          # row vector for the VPU reduction
    b2r = b2.reshape(1, 1)

    in_bytes = embeddings.dtype.itemsize
    w_bytes = w1.dtype.itemsize
    out_dtype = jnp.promote_types(embeddings.dtype, w1.dtype)

    # Row tiling (no padding of the inputs; Pallas handles the ragged tail block).
    VMEM_BUDGET = 40 * 1024 * 1024          # sized for v7x's 64 MiB physical VMEM
    if B <= 256:
        tm = B                              # single full-extent block
    else:
        # >= 2 row blocks so both v7x TensorCores get work; cap by block_rows.
        tm = min(block_rows, _round_up(pl.cdiv(B, 2), 8))
        while tm > 8 and _vmem_estimate(tm, H, in_bytes, w_bytes) > VMEM_BUDGET:
            tm = max(8, (tm // 2) // 8 * 8)
    num_blocks = pl.cdiv(B, tm)

    vmem_limit = int(min(48 * 1024 * 1024,
                         max(32 * 1024 * 1024,
                             2 * _vmem_estimate(tm, H, in_bytes, w_bytes))))

    vmem = pltpu.MemorySpace.VMEM
    out = pl.pallas_call(
        discriminator_kernel,
        out_shape=jax.ShapeDtypeStruct((B, 1), out_dtype),
        grid_spec=pltpu.PrefetchScalarGridSpec(
            num_scalar_prefetch=0,
            grid=(num_blocks,),
            in_specs=[
                pl.BlockSpec((tm, H), lambda i: (i, 0), memory_space=vmem),  # embeddings
                pl.BlockSpec((tm, H), lambda i: (i, 0), memory_space=vmem),  # positive
                pl.BlockSpec((H, H), lambda i: (0, 0), memory_space=vmem),   # W1[:H]
                pl.BlockSpec((H, H), lambda i: (0, 0), memory_space=vmem),   # W1[H:]
                pl.BlockSpec((1, H), lambda i: (0, 0), memory_space=vmem),   # b1
                pl.BlockSpec((1, H), lambda i: (0, 0), memory_space=vmem),   # W2 (row)
                pl.BlockSpec((1, 1), lambda i: (0, 0), memory_space=vmem),   # b2
            ],
            out_specs=pl.BlockSpec((tm, 1), lambda i: (i, 0), memory_space=vmem),
        ),
        compiler_params=pltpu.CompilerParams(
            dimension_semantics=("parallel",),   # shards row blocks across TCs on v7x
            vmem_limit_bytes=vmem_limit,
        ),
    )(embeddings, positive, w1e, w1p, b1r, w2r, b2r)

    return out


# ----------------------------------------------------------------------------
# Demo / self-check
# ----------------------------------------------------------------------------
if __name__ == "__main__":
    batch = 8
    hidden = 32

    key = jax.random.PRNGKey(0)
    ke, kp, k1w, k1b, k2w, k2b = jax.random.split(key, 6)

    embeddings = jax.random.normal(ke, (batch, hidden), jnp.float32)
    positive = jax.random.normal(kp, (batch, hidden), jnp.float32)

    # Parameters in (in, out) layout (math-equivalent to torch's x @ W.T + b).
    w1 = jax.random.normal(k1w, (2 * hidden, hidden), jnp.float32) * 0.1
    b1 = jax.random.normal(k1b, (hidden,), jnp.float32) * 0.1
    w2 = jax.random.normal(k2w, (hidden, 1), jnp.float32) * 0.1
    b2 = jax.random.normal(k2b, (1,), jnp.float32) * 0.1

    fwd = jax.jit(discriminator_forward)   # fuses the weight split/reshape with the call

    out = jax.block_until_ready(fwd(embeddings, positive, w1, b1, w2, b2))

    # Pure-JAX reference.
    cat = jnp.concatenate([embeddings, positive], axis=-1)
    ref = jnp.maximum(cat @ w1 + b1[None, :], 0.0)
    ref = jnp.maximum(ref @ w2 + b2[None, :], 0.0)

    assert out.shape == (batch, 1)
    assert jnp.allclose(out, ref, atol=1e-5), (out, ref)

    # bf16 path (inputs/weights fed without upcast; f32 accumulation in-kernel).
    out_bf = jax.block_until_ready(fwd(
        embeddings.astype(jnp.bfloat16), positive.astype(jnp.bfloat16),
        w1.astype(jnp.bfloat16), b1.astype(jnp.bfloat16),
        w2.astype(jnp.bfloat16), b2.astype(jnp.bfloat16)))
    assert jnp.allclose(out_bf.astype(jnp.float32), ref, atol=5e-2, rtol=5e-2)

    print("KERNEL_OK")
</pallas_src>

<mosaic_0001>
module attributes {stable_mosaic.version = 11 : i64} {
  func.func @discriminator_kernel(%arg0: i32, %arg1: memref<8x32xf32, #tpu.memory_space<vmem>>, %arg2: memref<8x32xf32, #tpu.memory_space<vmem>>, %arg3: memref<32x32xf32, #tpu.memory_space<vmem>>, %arg4: memref<32x32xf32, #tpu.memory_space<vmem>>, %arg5: memref<1x32xf32, #tpu.memory_space<vmem>>, %arg6: memref<1x32xf32, #tpu.memory_space<vmem>>, %arg7: memref<1x1xf32, #tpu.memory_space<vmem>>, %arg8: memref<8x1xf32, #tpu.memory_space<vmem>>) attributes {dimension_semantics = [#tpu.dimension_semantics<parallel>], iteration_bounds = array<i64: 1>, scalar_prefetch = 0 : i64, scratch_operands = 0 : i64, tpu.core_type = #tpu.core_type<tc>, window_params = [{transform_indices = @transform_0, window_bounds = array<i64: 8, 32>}, {transform_indices = @transform_1, window_bounds = array<i64: 8, 32>}, {pipeline_mode = #tpu.pipeline_mode<synchronous>, transform_indices = @transform_2, window_bounds = array<i64: 32, 32>}, {pipeline_mode = #tpu.pipeline_mode<synchronous>, transform_indices = @transform_3, window_bounds = array<i64: 32, 32>}, {pipeline_mode = #tpu.pipeline_mode<synchronous>, transform_indices = @transform_4, window_bounds = array<i64: 1, 32>}, {pipeline_mode = #tpu.pipeline_mode<synchronous>, transform_indices = @transform_5, window_bounds = array<i64: 1, 32>}, {pipeline_mode = #tpu.pipeline_mode<synchronous>, transform_indices = @transform_6, window_bounds = array<i64: 1, 1>}, {transform_indices = @transform_7, window_bounds = array<i64: 8, 1>}]} {
    %c0 = arith.constant 0 : index
    %c0_0 = arith.constant 0 : index
    %0 = vector.load %arg1[%c0, %c0_0] : memref<8x32xf32, #tpu.memory_space<vmem>>, vector<8x32xf32>
    %c0_1 = arith.constant 0 : index
    %c0_2 = arith.constant 0 : index
    %1 = vector.load %arg3[%c0_1, %c0_2] : memref<32x32xf32, #tpu.memory_space<vmem>>, vector<32x32xf32>
    %cst = arith.constant dense<0.000000e+00> : vector<8x32xf32>
    %2 = tpu.matmul %0, %1, %cst {dimension_numbers = #tpu.dot_dimension_numbers<[1], [0], [0], [1], [0, 0, 1, 1], [], []>} : vector<8x32xf32>, vector<32x32xf32>, vector<8x32xf32> -> vector<8x32xf32>
    %c0_3 = arith.constant 0 : index
    %c0_4 = arith.constant 0 : index
    %3 = vector.load %arg2[%c0_3, %c0_4] : memref<8x32xf32, #tpu.memory_space<vmem>>, vector<8x32xf32>
    %c0_5 = arith.constant 0 : index
    %c0_6 = arith.constant 0 : index
    %4 = vector.load %arg4[%c0_5, %c0_6] : memref<32x32xf32, #tpu.memory_space<vmem>>, vector<32x32xf32>
    %cst_7 = arith.constant dense<0.000000e+00> : vector<8x32xf32>
    %5 = tpu.matmul %3, %4, %cst_7 {dimension_numbers = #tpu.dot_dimension_numbers<[1], [0], [0], [1], [0, 0, 1, 1], [], []>} : vector<8x32xf32>, vector<32x32xf32>, vector<8x32xf32> -> vector<8x32xf32>
    %6 = arith.addf %2, %5 : vector<8x32xf32>
    %c0_8 = arith.constant 0 : index
    %c0_9 = arith.constant 0 : index
    %7 = vector.load %arg5[%c0_8, %c0_9] : memref<1x32xf32, #tpu.memory_space<vmem>>, vector<1x32xf32>
    %8 = vector.broadcast %7 : vector<1x32xf32> to vector<8x32xf32>
    %9 = arith.addf %6, %8 : vector<8x32xf32>
    %cst_10 = arith.constant 0.000000e+00 : f32
    %10 = vector.broadcast %cst_10 : f32 to vector<8x32xf32>
    %11 = arith.maximumf %9, %10 : vector<8x32xf32>
    %c0_11 = arith.constant 0 : index
    %c0_12 = arith.constant 0 : index
    %12 = vector.load %arg6[%c0_11, %c0_12] : memref<1x32xf32, #tpu.memory_space<vmem>>, vector<1x32xf32>
    %13 = vector.broadcast %12 : vector<1x32xf32> to vector<8x32xf32>
    %14 = arith.mulf %11, %13 : vector<8x32xf32>
    %cst_13 = arith.constant dense<0.000000e+00> : vector<8xf32>
    %15 = vector.multi_reduction <add>, %14, %cst_13 [1] : vector<8x32xf32> to vector<8xf32>
    %16 = vector.shape_cast %15 : vector<8xf32> to vector<8x1xf32>
    %c0_14 = arith.constant 0 : index
    %c0_15 = arith.constant 0 : index
    %17 = vector.load %arg7[%c0_14, %c0_15] : memref<1x1xf32, #tpu.memory_space<vmem>>, vector<1x1xf32>
    %18 = vector.broadcast %17 : vector<1x1xf32> to vector<8x1xf32>
    %19 = arith.addf %16, %18 : vector<8x1xf32>
    %cst_16 = arith.constant 0.000000e+00 : f32
    %20 = vector.broadcast %cst_16 : f32 to vector<8x1xf32>
    %21 = arith.maximumf %19, %20 : vector<8x1xf32>
    %c0_17 = arith.constant 0 : index
    %c0_18 = arith.constant 0 : index
    %22 = vector.load %arg8[%c0_17, %c0_18] : memref<8x1xf32, #tpu.memory_space<vmem>>, vector<8x1xf32>
    tpu.vector_store %arg8[%c0_17, %c0_18], %21 {strides = array<i32>} : memref<8x1xf32, #tpu.memory_space<vmem>>, vector<8x1xf32>,
    return
  }
  func.func @transform_0(%arg0: i32) -> (i32, i32) {
    %c0_i32 = arith.constant 0 : i32
    %c0_i32_0 = arith.constant 0 : i32
    return %arg0, %c0_i32 : i32, i32
  }
  func.func @transform_1(%arg0: i32) -> (i32, i32) {
    %c0_i32 = arith.constant 0 : i32
    %c0_i32_0 = arith.constant 0 : i32
    return %arg0, %c0_i32 : i32, i32
  }
  func.func @transform_2(%arg0: i32) -> (i32, i32) {
    %c0_i32 = arith.constant 0 : i32
    %c0_i32_0 = arith.constant 0 : i32
    %c0_i32_1 = arith.constant 0 : i32
    return %c0_i32, %c0_i32_0 : i32, i32
  }
  func.func @transform_3(%arg0: i32) -> (i32, i32) {
    %c0_i32 = arith.constant 0 : i32
    %c0_i32_0 = arith.constant 0 : i32
    %c0_i32_1 = arith.constant 0 : i32
    return %c0_i32, %c0_i32_0 : i32, i32
  }
  func.func @transform_4(%arg0: i32) -> (i32, i32) {
    %c0_i32 = arith.constant 0 : i32
    %c0_i32_0 = arith.constant 0 : i32
    %c0_i32_1 = arith.constant 0 : i32
    return %c0_i32, %c0_i32_0 : i32, i32
  }
  func.func @transform_5(%arg0: i32) -> (i32, i32) {
    %c0_i32 = arith.constant 0 : i32
    %c0_i32_0 = arith.constant 0 : i32
    %c0_i32_1 = arith.constant 0 : i32
    return %c0_i32, %c0_i32_0 : i32, i32
  }
  func.func @transform_6(%arg0: i32) -> (i32, i32) {
    %c0_i32 = arith.constant 0 : i32
    %c0_i32_0 = arith.constant 0 : i32
    %c0_i32_1 = arith.constant 0 : i32
    return %c0_i32, %c0_i32_0 : i32, i32
  }
  func.func @transform_7(%arg0: i32) -> (i32, i32) {
    %c0_i32 = arith.constant 0 : i32
    %c0_i32_0 = arith.constant 0 : i32
    return %arg0, %c0_i32 : i32, i32
  }
}

</mosaic_0001>

<llo_original>
// kernel: discriminator_forward.1
$region0: #{discriminator_forward.1}
  #allocation0 [shape = 'u32[]', space=smem, size = 0x4, offset = 0x4, fixed_abs, tag = 'smem constant byte address 0x4 - core index']
  #allocation1 [shape = 'u32[144,128]{1,0:T(1,128)}', space=vmem, size = 0x12000, scoped, tag = 'internal scratch']
  #allocation2 [shape = 'f32[1,1]{1,0:T(1,128)S(1)}', space=vmem, size = 0x200, scoped, tag = 'scoped memory for discriminator_forward.1']
  %s0 = inlined_call_operand.vmem [shape: f32[8,32], index: 0, kind: input, shape index: {}]
  %s1 = inlined_call_operand.vmem [shape: f32[8,32], index: 1, kind: input, shape index: {}]
  %s2 = inlined_call_operand.vmem [shape: f32[32,32], index: 2, kind: input, shape index: {}]
  %s3 = inlined_call_operand.vmem [shape: f32[32,32], index: 3, kind: input, shape index: {}]
  %s4 = inlined_call_operand.vmem [shape: f32[1,32], index: 4, kind: input, shape index: {}]
  %s5 = inlined_call_operand.vmem [shape: f32[1,32], index: 5, kind: input, shape index: {}]
  %s6 = inlined_call_operand.<no memory space> [shape: f32[1,1], index: 6, kind: input, shape index: {}]
  %s7 = inlined_call_operand.vmem [shape: f32[8,1], index: 7, kind: output, shape index: {}]
  %s8 = sld [smem:[#allocation0]]
  $region38: #{discriminator_forward.1} parent=0
    _
  %s10 = ssub.s32 1, %s8
  %s11 = scalar_select 0, %s10, %s8
  %v12 = vstv %s6
  %13 = vst [vmem:[#allocation2] sm:$0x1] %v12
  // Predicated region
  $region2: #{discriminator_forward.1} parent=0 // pred_check
    _
  $region3: #{discriminator_forward.1} parent=0 // pred_check_branch
    %15 = sbr.rel (0) target = $region5
  $region4: #{discriminator_forward.1} parent=0 // pred_region
    _
  $region5: #{discriminator_forward.1} parent=0 // pred_fallthru
    _
  // Predicated region
  $region6: #{discriminator_forward.1} parent=0 // pred_check
    _
  $region7: #{discriminator_forward.1} parent=0 // pred_check_branch
    %17 = sbr.rel (0) target = $region9
  $region8: #{discriminator_forward.1} parent=0 // pred_region
    _
  $region9: #{discriminator_forward.1} parent=0 // pred_fallthru
    _
  // Predicated region
  $region10: #{discriminator_forward.1} parent=0 // pred_check
    _
  $region11: #{discriminator_forward.1} parent=0 // pred_check_branch
    %19 = sbr.rel (0) target = $region13
  $region12: #{discriminator_forward.1} parent=0 // pred_region
    _
  $region13: #{discriminator_forward.1} parent=0 // pred_fallthru
    _
  // Predicated region
  $region14: #{discriminator_forward.1} parent=0 // pred_check
    _
  $region15: #{discriminator_forward.1} parent=0 // pred_check_branch
    %21 = sbr.rel (0) target = $region17
  $region16: #{discriminator_forward.1} parent=0 // pred_region
    _
  $region17: #{discriminator_forward.1} parent=0 // pred_fallthru
    _
  // Predicated region
  $region18: #{discriminator_forward.1} parent=0 // pred_check
    _
  $region19: #{discriminator_forward.1} parent=0 // pred_check_branch
    %23 = sbr.rel (0) target = $region21
  $region20: #{discriminator_forward.1} parent=0 // pred_region
    _
  $region21: #{discriminator_forward.1} parent=0 // pred_fallthru
    _
  // Predicated region
  $region22: #{discriminator_forward.1} parent=0 // pred_check
    _
  $region23: #{discriminator_forward.1} parent=0 // pred_check_branch
    %25 = sbr.rel (0) target = $region25
  $region24: #{discriminator_forward.1} parent=0 // pred_region
    _
  $region25: #{discriminator_forward.1} parent=0 // pred_fallthru
    _
  // Predicated region
  $region26: #{discriminator_forward.1} parent=0 // pred_check
    _
  $region27: #{discriminator_forward.1} parent=0 // pred_check_branch
    %27 = sbr.rel (0) target = $region29
  $region28: #{discriminator_forward.1} parent=0 // pred_region
    _
  $region29: #{discriminator_forward.1} parent=0 // pred_fallthru
    _
  %v28 = vld [vmem:[%s0] sm:$0xff]
  %v29 = vld [vmem:[%s2] sm:$0xff]
  %v30 = vld [vmem:[%s2 + $0x8] sm:$0xff]
  %v31 = vld [vmem:[%s2 + $0x10] sm:$0xff]
  %v32 = vld [vmem:[%s2 + $0x18] sm:$0xff]
  %v33 = vld [vmem:[%s1] sm:$0xff]
  %v34 = vld [vmem:[%s3] sm:$0xff]
  %v35 = vld [vmem:[%s3 + $0x8] sm:$0xff]
  %v36 = vld [vmem:[%s3 + $0x10] sm:$0xff]
  %v37 = vld [vmem:[%s3 + $0x18] sm:$0xff]
  %vm38 = vcmask 261120
  %v40 = vsel %vm38, %v33, 0
  %42 = vmatprep.subr.mxu0 0.0
  %43 = vmatpush1.msra.mxu0 0.0
  %44 = vmatprep.subr.mxu0 0.0
  %45 = vmatpush1.msra.mxu0 0.0
  %46 = vmatprep.subr.mxu0 0.0
  %47 = vmatpush1.msra.mxu0 0.0
  %48 = vmatprep.subr.mxu0 0.0
  %49 = vmatpush1.msra.mxu0 0.0
  %50 = vmatprep.subr.mxu0 0.0
  %51 = vmatpush1.msra.mxu0 0.0
  %52 = vmatprep.subr.mxu0 0.0
  %53 = vmatpush1.msra.mxu0 0.0
  %54 = vmatprep.subr.mxu0 0.0
  %55 = vmatpush1.msra.mxu0 0.0
  %56 = vmatprep.subr.mxu0 0.0
  %57 = vmatpush1.msra.mxu0 0.0
  %58 = vmatprep.subr.mxu0 0.0
  %59 = vmatpush1.msra.mxu0 0.0
  %60 = vmatprep.subr.mxu0 0.0
  %61 = vmatpush1.msra.mxu0 0.0
  %62 = vmatprep.subr.mxu0 0.0
  %63 = vmatpush1.msra.mxu0 0.0
  %64 = vmatprep.subr.mxu0 0.0
  %65 = vmatpush1.msra.mxu0 0.0
  %66 = vmatprep.subr.mxu0 0.0
  %67 = vmatpush1.msra.mxu0 %v37
  %68 = vmatprep.subr.mxu0 0.0
  %69 = vmatpush1.msra.mxu0 %v36
  %70 = vmatprep.subr.mxu0 0.0
  %71 = vmatpush1.msra.mxu0 %v35
  %72 = vmatprep.subr.mxu0 0.0
  %73 = vmatpush1.msra.mxu0 %v34
  %74 = vmatprep.subr.mxu0 0.0
  %75 = vmatpush2.msra.mxu0 0.0
  %76 = vmatprep.subr.mxu0 0.0
  %77 = vmatpush2.msra.mxu0 0.0
  %78 = vmatprep.subr.mxu0 0.0
  %79 = vmatpush2.msra.mxu0 0.0
  %80 = vmatprep.subr.mxu0 0.0
  %81 = vmatpush2.msra.mxu0 0.0
  %82 = vmatprep.subr.mxu0 0.0
  %83 = vmatpush2.msra.mxu0 0.0
  %84 = vmatprep.subr.mxu0 0.0
  %85 = vmatpush2.msra.mxu0 0.0
  %86 = vmatprep.subr.mxu0 0.0
  %87 = vmatpush2.msra.mxu0 0.0
  %88 = vmatprep.subr.mxu0 0.0
  %89 = vmatpush2.msra.mxu0 0.0
  %90 = vmatprep.subr.mxu0 0.0
  %91 = vmatpush2.msra.mxu0 0.0
  %92 = vmatprep.subr.mxu0 0.0
  %93 = vmatpush2.msra.mxu0 0.0
  %94 = vmatprep.subr.mxu0 0.0
  %95 = vmatpush2.msra.mxu0 0.0
  %96 = vmatprep.subr.mxu0 0.0
  %97 = vmatpush2.msra.mxu0 0.0
  %98 = vmatprep.subr.mxu0 0.0
  %99 = vmatpush2.msra.mxu0 0.0
  %100 = vmatprep.subr.mxu0 0.0
  %101 = vmatpush2.msra.mxu0 0.0
  %102 = vmatprep.subr.mxu0 0.0
  %103 = vmatpush2.msra.mxu0 0.0
  %104 = vmatprep.subr.mxu0 0.0
  %105 = vmatpush2.msra.mxu0 0.0
  %106 = vmatprep.mubr.f32.mxu0 0.0
  %107 = vmatmul.mubr.f32.gmra.mxu0 %v40
  %v108 = vpop.f32.mrf.mxu0
  %v109 = vadd.f32 0.0, %v108
  %v110 = vpop.f32.mrf.mxu0
  %111 = vdwg.mxu0
  %v113 = vsel %vm38, %v28, 0
  %115 = vmatprep.subr.mxu0 0.0
  %116 = vmatpush1.msra.mxu0 0.0
  %117 = vmatprep.subr.mxu0 0.0
  %118 = vmatpush1.msra.mxu0 0.0
  %119 = vmatprep.subr.mxu0 0.0
  %120 = vmatpush1.msra.mxu0 0.0
  %121 = vmatprep.subr.mxu0 0.0
  %122 = vmatpush1.msra.mxu0 0.0
  %123 = vmatprep.subr.mxu0 0.0
  %124 = vmatpush1.msra.mxu0 0.0
  %125 = vmatprep.subr.mxu0 0.0
  %126 = vmatpush1.msra.mxu0 0.0
  %127 = vmatprep.subr.mxu0 0.0
  %128 = vmatpush1.msra.mxu0 0.0
  %129 = vmatprep.subr.mxu0 0.0
  %130 = vmatpush1.msra.mxu0 0.0
  %131 = vmatprep.subr.mxu0 0.0
  %132 = vmatpush1.msra.mxu0 0.0
  %133 = vmatprep.subr.mxu0 0.0
  %134 = vmatpush1.msra.mxu0 0.0
  %135 = vmatprep.subr.mxu0 0.0
  %136 = vmatpush1.msra.mxu0 0.0
  %137 = vmatprep.subr.mxu0 0.0
  %138 = vmatpush1.msra.mxu0 0.0
  %139 = vmatprep.subr.mxu0 0.0
  %140 = vmatpush1.msra.mxu0 %v32
  %141 = vmatprep.subr.mxu0 0.0
  %142 = vmatpush1.msra.mxu0 %v31
  %143 = vmatprep.subr.mxu0 0.0
  %144 = vmatpush1.msra.mxu0 %v30
  %145 = vmatprep.subr.mxu0 0.0
  %146 = vmatpush1.msra.mxu0 %v29
  %147 = vmatprep.subr.mxu0 0.0
  %148 = vmatpush2.msra.mxu0 0.0
  %149 = vmatprep.subr.mxu0 0.0
  %150 = vmatpush2.msra.mxu0 0.0
  %151 = vmatprep.subr.mxu0 0.0
  %152 = vmatpush2.msra.mxu0 0.0
  %153 = vmatprep.subr.mxu0 0.0
  %154 = vmatpush2.msra.mxu0 0.0
  %155 = vmatprep.subr.mxu0 0.0
  %156 = vmatpush2.msra.mxu0 0.0
  %157 = vmatprep.subr.mxu0 0.0
  %158 = vmatpush2.msra.mxu0 0.0
  %159 = vmatprep.subr.mxu0 0.0
  %160 = vmatpush2.msra.mxu0 0.0
  %161 = vmatprep.subr.mxu0 0.0
  %162 = vmatpush2.msra.mxu0 0.0
  %163 = vmatprep.subr.mxu0 0.0
  %164 = vmatpush2.msra.mxu0 0.0
  %165 = vmatprep.subr.mxu0 0.0
  %166 = vmatpush2.msra.mxu0 0.0
  %167 = vmatprep.subr.mxu0 0.0
  %168 = vmatpush2.msra.mxu0 0.0
  %169 = vmatprep.subr.mxu0 0.0
  %170 = vmatpush2.msra.mxu0 0.0
  %171 = vmatprep.subr.mxu0 0.0
  %172 = vmatpush2.msra.mxu0 0.0
  %173 = vmatprep.subr.mxu0 0.0
  %174 = vmatpush2.msra.mxu0 0.0
  %175 = vmatprep.subr.mxu0 0.0
  %176 = vmatpush2.msra.mxu0 0.0
  %177 = vmatprep.subr.mxu0 0.0
  %178 = vmatpush2.msra.mxu0 0.0
  %179 = vmatprep.mubr.f32.mxu0 0.0
  %180 = vmatmul.mubr.f32.gmra.mxu0 %v113
  %v181 = vpop.f32.mrf.mxu0
  %v182 = vadd.f32 %v109, %v181
  %v183 = vpop.f32.mrf.mxu0
  %184 = vdwg.mxu0
  %v185 = vld [vmem:[%s4] sm:$0x1]
  %v187 = vlaneseq
  %v188 = vshrl.u32 %v187, 7
  %v189 = vsub.s32 0, %v188
  %v190 = vrot.slane %v185, %v189
  %v192 = vadd.f32 %v182, %v190
  %v193 = vmax.f32 %v192, 0.0
  %v194 = vld [vmem:[%s5] sm:$0x1]
  %v196 = vlaneseq
  %v197 = vshrl.u32 %v196, 7
  %v198 = vsub.s32 0, %v197
  %v199 = vrot.slane %v194, %v198
  %v201 = vmul.f32 %v193, %v199
  %v202 = vsel %vm38, %v201, 0.0
  %203 = vadd.xlane.f32.xlu0 %v202
  %v204 = vpop.xlane.xlu0 %203
  %v205 = vld [vmem:[#allocation2] sm:$0x1]
  %v207 = vlaneseq
  %v208 = vshrl.u32 %v207, 7
  %v209 = vsub.s32 0, %v208
  %v210 = vrot.slane %v205, %v209
  %v212 = vadd.f32 %v204, %v210
  %v213 = vmax.f32 %v212, 0.0
  %vm214 = vcmask 7168
  %215 = vst.msk [vmem:[%s7] sm:$0xff] %vm214, %v213
  // Predicated region
  $region30: #{discriminator_forward.1} parent=0 // pred_check
    _
  $region31: #{discriminator_forward.1} parent=0 // pred_check_branch
    %217 = sbr.rel (0) target = $region33
  $region32: #{discriminator_forward.1} parent=0 // pred_region
    _
  $region33: #{discriminator_forward.1} parent=0 // pred_fallthru
    _
  // Predicated region
  $region34: #{discriminator_forward.1} parent=0 // pred_check
    _
  $region35: #{discriminator_forward.1} parent=0 // pred_check_branch
    %219 = sbr.rel (0) target = $region37
  $region36: #{discriminator_forward.1} parent=0 // pred_region
    _
  $region37: #{discriminator_forward.1} parent=0 // pred_fallthru
    _

</llo_original>
